<compile_context>
chip_gen: v7x
topology: tpu7x:2x2x1
jax: 0.10.0
libtpu: 0.0.40
codegen_flags: <defaults>
</compile_context>

<pallas_src>
import jax
import jax.numpy as jnp
from jax.experimental import pallas as pl
from jax.experimental.pallas import tpu as pltpu

TILE_B = 512  # batch rows per grid step; multiple of 128 lanes, tiny VMEM footprint


def controller_kernel(t_ref, w1_ref, b1_ref, w2_ref, b2_ref, o_ref):
    t = t_ref[...]                                                    # (dim_t, TILE_B)
    h = jnp.dot(w1_ref[...], t, preferred_element_type=jnp.float32)   # (H, TILE_B)
    h = jnp.tanh(h + b1_ref[...])                                     # (H, 1) lane-broadcast
    o = jnp.dot(w2_ref[...], h, preferred_element_type=jnp.float32)   # (U, TILE_B)
    o_ref[...] = o + b2_ref[...]                                      # (U, 1) lane-broadcast


def controller_forward(t, x, params, tile_b=TILE_B):
    """Mirrors Controller.forward(t, x): ignores x, returns net(t) with shape (B, dim_u)."""
    del x  # Controller.forward does not use x
    w1, b1, w2, b2 = params          # (H,dim_t), (H,1), (U,H), (U,1) -- PyTorch weight layout
    B, dim_t = t.shape
    H = w1.shape[0]
    U = w2.shape[0]

    nb = pl.cdiv(B, tile_b)
    b_pad = nb * tile_b
    # Feature-major input, zero-padded along the batch (lane) axis to a tile multiple.
    t_fm = jnp.pad(t.astype(jnp.float32).T, ((0, 0), (0, b_pad - B)))

    out_fm = pl.pallas_call(
        controller_kernel,
        out_shape=jax.ShapeDtypeStruct((U, b_pad), jnp.float32),
        grid=(nb,),
        in_specs=[
            pl.BlockSpec((dim_t, tile_b), lambda i: (0, i)),   # streamed per batch tile
            pl.BlockSpec((H, dim_t), lambda i: (0, 0)),        # weights/biases stay resident
            pl.BlockSpec((H, 1), lambda i: (0, 0)),
            pl.BlockSpec((U, H), lambda i: (0, 0)),
            pl.BlockSpec((U, 1), lambda i: (0, 0)),
        ],
        out_specs=pl.BlockSpec((U, tile_b), lambda i: (0, i)),
        compiler_params=pltpu.CompilerParams(
            dimension_semantics=("parallel",)),                # megacore split on v7x
    )(t_fm, w1, b1, w2, b2)

    # Drop batch padding and return batch-major, like the PyTorch module.
    return out_fm[:, :B].T


def init_controller_params(key, dim_t, dim_u, hidden=10):
    # nn.init.normal_(weight, mean=0, std=0.1); nn.init.constant_(bias, 0)
    k1, k2 = jax.random.split(key)
    w1 = 0.1 * jax.random.normal(k1, (hidden, dim_t), dtype=jnp.float32)  # (out, in) like torch
    b1 = jnp.zeros((hidden, 1), dtype=jnp.float32)
    w2 = 0.1 * jax.random.normal(k2, (dim_u, hidden), dtype=jnp.float32)
    b2 = jnp.zeros((dim_u, 1), dtype=jnp.float32)
    return w1, b1, w2, b2


def reference_forward(t, params):
    w1, b1, w2, b2 = params
    return jnp.tanh(t @ w1.T + b1.T) @ w2.T + b2.T


if __name__ == "__main__":
    key = jax.random.PRNGKey(0)
    k_param, k_t, k_x, k_t2 = jax.random.split(key, 4)

    batch, dim_t, dim_u, dim_x = 8, 4, 3, 6
    params = init_controller_params(k_param, dim_t, dim_u)

    t_in = jax.random.normal(k_t, (batch, dim_t), dtype=jnp.float32)
    x_in = jax.random.normal(k_x, (batch, dim_x), dtype=jnp.float32)  # unused, like PyTorch

    out = jax.block_until_ready(controller_forward(t_in, x_in, params))
    ref = reference_forward(t_in, params)
    assert out.shape == (batch, dim_u)
    assert jnp.allclose(out, ref, atol=1e-5, rtol=1e-5)

    # Second check exercises the multi-tile grid path and the ragged (padded) last tile.
    batch2 = 1100
    t2 = jax.random.normal(k_t2, (batch2, dim_t), dtype=jnp.float32)
    out2 = jax.block_until_ready(controller_forward(t2, None, params))
    ref2 = reference_forward(t2, params)
    assert out2.shape == (batch2, dim_u)
    assert jnp.allclose(out2, ref2, atol=1e-5, rtol=1e-5)

    print("KERNEL_OK")
</pallas_src>

<mosaic_0001>
module attributes {stable_mosaic.version = 11 : i64} {
  func.func @controller_kernel(%arg0: i32, %arg1: memref<4x512xf32, #tpu.memory_space<vmem>>, %arg2: memref<10x4xf32, #tpu.memory_space<vmem>>, %arg3: memref<10x1xf32, #tpu.memory_space<vmem>>, %arg4: memref<3x10xf32, #tpu.memory_space<vmem>>, %arg5: memref<3x1xf32, #tpu.memory_space<vmem>>, %arg6: memref<3x512xf32, #tpu.memory_space<vmem>>) attributes {dimension_semantics = [#tpu.dimension_semantics<parallel>], iteration_bounds = array<i64: 1>, scalar_prefetch = 0 : i64, scratch_operands = 0 : i64, tpu.core_type = #tpu.core_type<tc>, window_params = [{transform_indices = @transform_0, window_bounds = array<i64: 4, 512>}, {pipeline_mode = #tpu.pipeline_mode<synchronous>, transform_indices = @transform_1, window_bounds = array<i64: 10, 4>}, {pipeline_mode = #tpu.pipeline_mode<synchronous>, transform_indices = @transform_2, window_bounds = array<i64: 10, 1>}, {pipeline_mode = #tpu.pipeline_mode<synchronous>, transform_indices = @transform_3, window_bounds = array<i64: 3, 10>}, {pipeline_mode = #tpu.pipeline_mode<synchronous>, transform_indices = @transform_4, window_bounds = array<i64: 3, 1>}, {transform_indices = @transform_5, window_bounds = array<i64: 3, 512>}]} {
    %c0 = arith.constant 0 : index
    %c0_0 = arith.constant 0 : index
    %0 = vector.load %arg1[%c0, %c0_0] : memref<4x512xf32, #tpu.memory_space<vmem>>, vector<4x512xf32>
    %c0_1 = arith.constant 0 : index
    %c0_2 = arith.constant 0 : index
    %1 = vector.load %arg2[%c0_1, %c0_2] : memref<10x4xf32, #tpu.memory_space<vmem>>, vector<10x4xf32>
    %cst = arith.constant dense<0.000000e+00> : vector<10x512xf32>
    %2 = tpu.matmul %1, %0, %cst {dimension_numbers = #tpu.dot_dimension_numbers<[1], [0], [0], [1], [0, 0, 1, 1], [], []>} : vector<10x4xf32>, vector<4x512xf32>, vector<10x512xf32> -> vector<10x512xf32>
    %c0_3 = arith.constant 0 : index
    %c0_4 = arith.constant 0 : index
    %3 = vector.load %arg3[%c0_3, %c0_4] : memref<10x1xf32, #tpu.memory_space<vmem>>, vector<10x1xf32>
    %4 = vector.broadcast %3 : vector<10x1xf32> to vector<10x512xf32>
    %5 = arith.addf %2, %4 : vector<10x512xf32>
    %6 = math.tanh %5 : vector<10x512xf32>
    %c0_5 = arith.constant 0 : index
    %c0_6 = arith.constant 0 : index
    %7 = vector.load %arg4[%c0_5, %c0_6] : memref<3x10xf32, #tpu.memory_space<vmem>>, vector<3x10xf32>
    %cst_7 = arith.constant dense<0.000000e+00> : vector<3x512xf32>
    %8 = tpu.matmul %7, %6, %cst_7 {dimension_numbers = #tpu.dot_dimension_numbers<[1], [0], [0], [1], [0, 0, 1, 1], [], []>} : vector<3x10xf32>, vector<10x512xf32>, vector<3x512xf32> -> vector<3x512xf32>
    %c0_8 = arith.constant 0 : index
    %c0_9 = arith.constant 0 : index
    %9 = vector.load %arg5[%c0_8, %c0_9] : memref<3x1xf32, #tpu.memory_space<vmem>>, vector<3x1xf32>
    %10 = vector.broadcast %9 : vector<3x1xf32> to vector<3x512xf32>
    %11 = arith.addf %8, %10 : vector<3x512xf32>
    %c0_10 = arith.constant 0 : index
    %c0_11 = arith.constant 0 : index
    %12 = vector.load %arg6[%c0_10, %c0_11] : memref<3x512xf32, #tpu.memory_space<vmem>>, vector<3x512xf32>
    tpu.vector_store %arg6[%c0_10, %c0_11], %11 {strides = array<i32>} : memref<3x512xf32, #tpu.memory_space<vmem>>, vector<3x512xf32>,
    return
  }
  func.func @transform_0(%arg0: i32) -> (i32, i32) {
    %c0_i32 = arith.constant 0 : i32
    %c0_i32_0 = arith.constant 0 : i32
    return %c0_i32, %arg0 : i32, i32
  }
  func.func @transform_1(%arg0: i32) -> (i32, i32) {
    %c0_i32 = arith.constant 0 : i32
    %c0_i32_0 = arith.constant 0 : i32
    %c0_i32_1 = arith.constant 0 : i32
    return %c0_i32, %c0_i32_0 : i32, i32
  }
  func.func @transform_2(%arg0: i32) -> (i32, i32) {
    %c0_i32 = arith.constant 0 : i32
    %c0_i32_0 = arith.constant 0 : i32
    %c0_i32_1 = arith.constant 0 : i32
    return %c0_i32, %c0_i32_0 : i32, i32
  }
  func.func @transform_3(%arg0: i32) -> (i32, i32) {
    %c0_i32 = arith.constant 0 : i32
    %c0_i32_0 = arith.constant 0 : i32
    %c0_i32_1 = arith.constant 0 : i32
    return %c0_i32, %c0_i32_0 : i32, i32
  }
  func.func @transform_4(%arg0: i32) -> (i32, i32) {
    %c0_i32 = arith.constant 0 : i32
    %c0_i32_0 = arith.constant 0 : i32
    %c0_i32_1 = arith.constant 0 : i32
    return %c0_i32, %c0_i32_0 : i32, i32
  }
  func.func @transform_5(%arg0: i32) -> (i32, i32) {
    %c0_i32 = arith.constant 0 : i32
    %c0_i32_0 = arith.constant 0 : i32
    return %c0_i32, %arg0 : i32, i32
  }
}

</mosaic_0001>

<llo_original>
// kernel: tpu_custom_call.1
$region0: #{tpu_custom_call.1}
  #allocation0 [shape = 'u32[]', space=smem, size = 0x4, offset = 0x4, fixed_abs, tag = 'smem constant byte address 0x4 - core index']
  #allocation1 [shape = 'u32[144,128]{1,0:T(1,128)}', space=vmem, size = 0x12000, scoped, tag = 'internal scratch']
  %s0 = inlined_call_operand.vmem [shape: f32[4,512], index: 0, kind: input, shape index: {}]
  %s1 = inlined_call_operand.vmem [shape: f32[10,4], index: 1, kind: input, shape index: {}]
  %s2 = inlined_call_operand.vmem [shape: f32[10,1], index: 2, kind: input, shape index: {}]
  %s3 = inlined_call_operand.vmem [shape: f32[3,10], index: 3, kind: input, shape index: {}]
  %s4 = inlined_call_operand.vmem [shape: f32[3,1], index: 4, kind: input, shape index: {}]
  %s5 = inlined_call_operand.hbm [shape: f32[3,512], index: 5, kind: output, shape index: {}]
  %s6 = sld [smem:[#allocation0]]
  $region30: #{tpu_custom_call.1} parent=0
    _
  %s8 = ssub.s32 1, %s6
  %s9 = scalar_select 0, %s8, %s6
  $region1: #{tpu_custom_call.1} parent=0
    #allocation2 [shape = 'u8[8192]{0}', space=vmem, size = 0x2000, scoped, tag = 'output window, operand 0, single buffered']
    #allocation3 [shape = 's32[1]{0}', space=sflag, size = 0x4, scoped, tag = 'scoped memory for tpu_custom_call.1']
    %10 = vsyncpa [#allocation3], 0
    // Predicated region
    $region2: #{tpu_custom_call.1} parent=1 // pred_check
      _
    $region3: #{tpu_custom_call.1} parent=1 // pred_check_branch
      %12 = sbr.rel (0) target = $region5
    $region4: #{tpu_custom_call.1} parent=1 // pred_region
      _
    $region5: #{tpu_custom_call.1} parent=1 // pred_fallthru
      _
    // Predicated region
    $region6: #{tpu_custom_call.1} parent=1 // pred_check
      _
    $region7: #{tpu_custom_call.1} parent=1 // pred_check_branch
      %14 = sbr.rel (0) target = $region9
    $region8: #{tpu_custom_call.1} parent=1 // pred_region
      _
    $region9: #{tpu_custom_call.1} parent=1 // pred_fallthru
      _
    // Predicated region
    $region10: #{tpu_custom_call.1} parent=1 // pred_check
      _
    $region11: #{tpu_custom_call.1} parent=1 // pred_check_branch
      %16 = sbr.rel (0) target = $region13
    $region12: #{tpu_custom_call.1} parent=1 // pred_region
      _
    $region13: #{tpu_custom_call.1} parent=1 // pred_fallthru
      _
    // Predicated region
    $region14: #{tpu_custom_call.1} parent=1 // pred_check
      _
    $region15: #{tpu_custom_call.1} parent=1 // pred_check_branch
      %18 = sbr.rel (0) target = $region17
    $region16: #{tpu_custom_call.1} parent=1 // pred_region
      _
    $region17: #{tpu_custom_call.1} parent=1 // pred_fallthru
      _
    // Predicated region
    $region18: #{tpu_custom_call.1} parent=1 // pred_check
      _
    $region19: #{tpu_custom_call.1} parent=1 // pred_check_branch
      %20 = sbr.rel (0) target = $region21
    $region20: #{tpu_custom_call.1} parent=1 // pred_region
      _
    $region21: #{tpu_custom_call.1} parent=1 // pred_fallthru
      _
    %v21 = vld [vmem:[%s0] sm:$0xff]
    %v22 = vld [vmem:[%s0 + $0x8] sm:$0xff]
    %v23 = vld [vmem:[%s1] sm:$0xff]
    %v24 = vld [vmem:[%s1 + $0x8] sm:$0x3]
    %v25 = vld [vmem:[%s2] sm:$0xff]
    %v26 = vld [vmem:[%s2 + $0x8] sm:$0x3]
    %28 = vset.pattern.permute.xlu0 0
    %29 = vperm.xlu0 %28, %v25
    %v30 = vpop.permute.xlu0 %29
    %33 = vset.pattern.permute.xlu0 0
    %34 = vperm.xlu0 %33, %v26
    %v35 = vpop.permute.xlu0 %34
    %v39 = vcombine.high %v21, %v21
    %v40 = vcombine.high %v22, %v22
    %vm41 = vcmask 31744
    %v43 = vsel %vm41, %v23, 0
    %v46 = vsel %vm41, %v24, 0
    %vm48 = vcmask 1043456
    %v49 = vsel %vm48, %v21, 0
    %v51 = vsel %vm48, %v39, 0
    %v53 = vsel %vm48, %v22, 0
    %v55 = vsel %vm48, %v40, 0
    %57 = vmatprep.subr.mxu0 %v51
    %58 = vmatpush1.msra.mxu0 %v49
    %59 = vmatprep.subr.mxu0 0.0
    %60 = vmatpush1.msra.mxu0 0.0
    %61 = vmatprep.subr.mxu0 0.0
    %62 = vmatpush1.msra.mxu0 0.0
    %63 = vmatprep.subr.mxu0 0.0
    %64 = vmatpush1.msra.mxu0 0.0
    %65 = vmatprep.subr.mxu0 0.0
    %66 = vmatpush1.msra.mxu0 0.0
    %67 = vmatprep.subr.mxu0 0.0
    %68 = vmatpush1.msra.mxu0 0.0
    %69 = vmatprep.subr.mxu0 0.0
    %70 = vmatpush1.msra.mxu0 0.0
    %71 = vmatprep.subr.mxu0 0.0
    %72 = vmatpush1.msra.mxu0 0.0
    %73 = vmatprep.subr.mxu0 0.0
    %74 = vmatpush1.msra.mxu0 0.0
    %75 = vmatprep.subr.mxu0 0.0
    %76 = vmatpush1.msra.mxu0 0.0
    %77 = vmatprep.subr.mxu0 0.0
    %78 = vmatpush1.msra.mxu0 0.0
    %79 = vmatprep.subr.mxu0 0.0
    %80 = vmatpush1.msra.mxu0 0.0
    %81 = vmatprep.subr.mxu0 0.0
    %82 = vmatpush1.msra.mxu0 0.0
    %83 = vmatprep.subr.mxu0 0.0
    %84 = vmatpush1.msra.mxu0 0.0
    %85 = vmatprep.subr.mxu0 0.0
    %86 = vmatpush1.msra.mxu0 0.0
    %87 = vmatprep.subr.mxu0 0.0
    %88 = vmatpush1.msra.mxu0 0.0
    %89 = vmatprep.subr.mxu0 0.0
    %90 = vmatpush1.msra.mxu0 0.0
    %91 = vmatprep.subr.mxu0 0.0
    %92 = vmatpush1.msra.mxu0 0.0
    %93 = vmatprep.subr.mxu0 0.0
    %94 = vmatpush1.msra.mxu0 0.0
    %95 = vmatprep.subr.mxu0 0.0
    %96 = vmatpush1.msra.mxu0 0.0
    %97 = vmatprep.subr.mxu0 0.0
    %98 = vmatpush1.msra.mxu0 0.0
    %99 = vmatprep.subr.mxu0 0.0
    %100 = vmatpush1.msra.mxu0 0.0
    %101 = vmatprep.subr.mxu0 0.0
    %102 = vmatpush1.msra.mxu0 0.0
    %103 = vmatprep.subr.mxu0 0.0
    %104 = vmatpush1.msra.mxu0 0.0
    %105 = vmatprep.subr.mxu0 0.0
    %106 = vmatpush1.msra.mxu0 0.0
    %107 = vmatprep.subr.mxu0 0.0
    %108 = vmatpush1.msra.mxu0 0.0
    %109 = vmatprep.subr.mxu0 0.0
    %110 = vmatpush1.msra.mxu0 0.0
    %111 = vmatprep.subr.mxu0 0.0
    %112 = vmatpush1.msra.mxu0 0.0
    %113 = vmatprep.subr.mxu0 0.0
    %114 = vmatpush1.msra.mxu0 0.0
    %115 = vmatprep.subr.mxu0 0.0
    %116 = vmatpush1.msra.mxu0 0.0
    %117 = vmatprep.subr.mxu0 0.0
    %118 = vmatpush1.msra.mxu0 0.0
    %119 = vmatprep.subr.mxu0 0.0
    %120 = vmatpush1.msra.mxu0 0.0
    %121 = vmatprep.mubr.f32.mxu0 0.0
    %122 = vmatmul.mubr.f32.gmra.mrb[0].mxu0 %v43
    %v123 = vpop.f32.mrb[0].mxu0
    %v124 = vadd.f32 %v30, %v123
    %v125 = vpop.f32.mrb[0].mxu0
    %v126 = vadd.f32 %v30, %v125
    %127 = vmatprep.mubr.f32.mxu0 0.0
    %128 = vmatmul.mubr.f32.gmra.mrb[0].mxu0 %v46
    %v129 = vpop.f32.mrb[0].mxu0
    %v130 = vadd.f32 %v35, %v129
    %v131 = vpop.f32.mrb[0].mxu0
    %v132 = vadd.f32 %v35, %v131
    %133 = vdwg.mxu0
    %134 = vmatprep.subr.mxu0 %v55
    %135 = vmatpush1.msra.mxu0 %v53
    %136 = vmatprep.subr.mxu0 0.0
    %137 = vmatpush1.msra.mxu0 0.0
    %138 = vmatprep.subr.mxu0 0.0
    %139 = vmatpush1.msra.mxu0 0.0
    %140 = vmatprep.subr.mxu0 0.0
    %141 = vmatpush1.msra.mxu0 0.0
    %142 = vmatprep.subr.mxu0 0.0
    %143 = vmatpush1.msra.mxu0 0.0
    %144 = vmatprep.subr.mxu0 0.0
    %145 = vmatpush1.msra.mxu0 0.0
    %146 = vmatprep.subr.mxu0 0.0
    %147 = vmatpush1.msra.mxu0 0.0
    %148 = vmatprep.subr.mxu0 0.0
    %149 = vmatpush1.msra.mxu0 0.0
    %150 = vmatprep.subr.mxu0 0.0
    %151 = vmatpush1.msra.mxu0 0.0
    %152 = vmatprep.subr.mxu0 0.0
    %153 = vmatpush1.msra.mxu0 0.0
    %154 = vmatprep.subr.mxu0 0.0
    %155 = vmatpush1.msra.mxu0 0.0
    %156 = vmatprep.subr.mxu0 0.0
    %157 = vmatpush1.msra.mxu0 0.0
    %158 = vmatprep.subr.mxu0 0.0
    %159 = vmatpush1.msra.mxu0 0.0
    %160 = vmatprep.subr.mxu0 0.0
    %161 = vmatpush1.msra.mxu0 0.0
    %162 = vmatprep.subr.mxu0 0.0
    %163 = vmatpush1.msra.mxu0 0.0
    %164 = vmatprep.subr.mxu0 0.0
    %165 = vmatpush1.msra.mxu0 0.0
    %166 = vmatprep.subr.mxu0 0.0
    %167 = vmatpush1.msra.mxu0 0.0
    %168 = vmatprep.subr.mxu0 0.0
    %169 = vmatpush1.msra.mxu0 0.0
    %170 = vmatprep.subr.mxu0 0.0
    %171 = vmatpush1.msra.mxu0 0.0
    %172 = vmatprep.subr.mxu0 0.0
    %173 = vmatpush1.msra.mxu0 0.0
    %174 = vmatprep.subr.mxu0 0.0
    %175 = vmatpush1.msra.mxu0 0.0
    %176 = vmatprep.subr.mxu0 0.0
    %177 = vmatpush1.msra.mxu0 0.0
    %178 = vmatprep.subr.mxu0 0.0
    %179 = vmatpush1.msra.mxu0 0.0
    %180 = vmatprep.subr.mxu0 0.0
    %181 = vmatpush1.msra.mxu0 0.0
    %182 = vmatprep.subr.mxu0 0.0
    %183 = vmatpush1.msra.mxu0 0.0
    %184 = vmatprep.subr.mxu0 0.0
    %185 = vmatpush1.msra.mxu0 0.0
    %186 = vmatprep.subr.mxu0 0.0
    %187 = vmatpush1.msra.mxu0 0.0
    %188 = vmatprep.subr.mxu0 0.0
    %189 = vmatpush1.msra.mxu0 0.0
    %190 = vmatprep.subr.mxu0 0.0
    %191 = vmatpush1.msra.mxu0 0.0
    %192 = vmatprep.subr.mxu0 0.0
    %193 = vmatpush1.msra.mxu0 0.0
    %194 = vmatprep.subr.mxu0 0.0
    %195 = vmatpush1.msra.mxu0 0.0
    %196 = vmatprep.subr.mxu0 0.0
    %197 = vmatpush1.msra.mxu0 0.0
    %198 = vmatprep.mubr.f32.mxu0 0.0
    %199 = vmatmul.mubr.f32.gmra.mrb[0].mxu0 %v43
    %v200 = vpop.f32.mrb[0].mxu0
    %v201 = vadd.f32 %v30, %v200
    %v202 = vpop.f32.mrb[0].mxu0
    %v203 = vadd.f32 %v30, %v202
    %204 = vmatprep.mubr.f32.mxu0 0.0
    %205 = vmatmul.mubr.f32.gmra.mrb[0].mxu0 %v46
    %v206 = vpop.f32.mrb[0].mxu0
    %v207 = vadd.f32 %v35, %v206
    %v208 = vpop.f32.mrb[0].mxu0
    %v209 = vadd.f32 %v35, %v208
    %210 = vdwg.mxu0
    %v211 = vtanh.pop %v124
    %v212 = vtanh.pop %v126
    %v213 = vtanh.pop %v201
    %v214 = vtanh.pop %v203
    %v215 = vtanh.pop %v130
    %v216 = vtanh.pop %v132
    %v217 = vtanh.pop %v207
    %v218 = vtanh.pop %v209
    %v219 = vld [vmem:[%s3] sm:$0x7]
    %v220 = vld [vmem:[%s4] sm:$0x7]
    %222 = vset.pattern.permute.xlu0 0
    %223 = vperm.xlu0 %222, %v220
    %v224 = vpop.permute.xlu0 %223
    %vm226 = vcmask 80896
    %v228 = vsel %vm226, %v219, 0
    %vm230 = vcmask 1041408
    %v232 = vsel %vm230, %v215, 0
    %v235 = vsel %vm230, %v216, 0
    %v238 = vsel %vm230, %v217, 0
    %v241 = vsel %vm230, %v218, 0
    %243 = vmatprep.subr.mxu0 %v212
    %244 = vmatpush1.msra.mxu0 %v211
    %245 = vmatprep.subr.mxu0 %v235
    %246 = vmatpush1.msra.mxu0 %v232
    %247 = vmatprep.subr.mxu0 0.0
    %248 = vmatpush1.msra.mxu0 0.0
    %249 = vmatprep.subr.mxu0 0.0
    %250 = vmatpush1.msra.mxu0 0.0
    %251 = vmatprep.subr.mxu0 0.0
    %252 = vmatpush1.msra.mxu0 0.0
    %253 = vmatprep.subr.mxu0 0.0
    %254 = vmatpush1.msra.mxu0 0.0
    %255 = vmatprep.subr.mxu0 0.0
    %256 = vmatpush1.msra.mxu0 0.0
    %257 = vmatprep.subr.mxu0 0.0
    %258 = vmatpush1.msra.mxu0 0.0
    %259 = vmatprep.subr.mxu0 0.0
    %260 = vmatpush1.msra.mxu0 0.0
    %261 = vmatprep.subr.mxu0 0.0
    %262 = vmatpush1.msra.mxu0 0.0
    %263 = vmatprep.subr.mxu0 0.0
    %264 = vmatpush1.msra.mxu0 0.0
    %265 = vmatprep.subr.mxu0 0.0
    %266 = vmatpush1.msra.mxu0 0.0
    %267 = vmatprep.subr.mxu0 0.0
    %268 = vmatpush1.msra.mxu0 0.0
    %269 = vmatprep.subr.mxu0 0.0
    %270 = vmatpush1.msra.mxu0 0.0
    %271 = vmatprep.subr.mxu0 0.0
    %272 = vmatpush1.msra.mxu0 0.0
    %273 = vmatprep.subr.mxu0 0.0
    %274 = vmatpush1.msra.mxu0 0.0
    %275 = vmatprep.subr.mxu0 0.0
    %276 = vmatpush1.msra.mxu0 0.0
    %277 = vmatprep.subr.mxu0 0.0
    %278 = vmatpush1.msra.mxu0 0.0
    %279 = vmatprep.subr.mxu0 0.0
    %280 = vmatpush1.msra.mxu0 0.0
    %281 = vmatprep.subr.mxu0 0.0
    %282 = vmatpush1.msra.mxu0 0.0
    %283 = vmatprep.subr.mxu0 0.0
    %284 = vmatpush1.msra.mxu0 0.0
    %285 = vmatprep.subr.mxu0 0.0
    %286 = vmatpush1.msra.mxu0 0.0
    %287 = vmatprep.subr.mxu0 0.0
    %288 = vmatpush1.msra.mxu0 0.0
    %289 = vmatprep.subr.mxu0 0.0
    %290 = vmatpush1.msra.mxu0 0.0
    %291 = vmatprep.subr.mxu0 0.0
    %292 = vmatpush1.msra.mxu0 0.0
    %293 = vmatprep.subr.mxu0 0.0
    %294 = vmatpush1.msra.mxu0 0.0
    %295 = vmatprep.subr.mxu0 0.0
    %296 = vmatpush1.msra.mxu0 0.0
    %297 = vmatprep.subr.mxu0 0.0
    %298 = vmatpush1.msra.mxu0 0.0
    %299 = vmatprep.subr.mxu0 0.0
    %300 = vmatpush1.msra.mxu0 0.0
    %301 = vmatprep.subr.mxu0 0.0
    %302 = vmatpush1.msra.mxu0 0.0
    %303 = vmatprep.subr.mxu0 0.0
    %304 = vmatpush1.msra.mxu0 0.0
    %305 = vmatprep.subr.mxu0 0.0
    %306 = vmatpush1.msra.mxu0 0.0
    %307 = vmatprep.mubr.f32.mxu0 0.0
    %308 = vmatmul.mubr.f32.gmra.mrb[0].mxu0 %v228
    %v309 = vpop.f32.mrb[0].mxu0
    %v310 = vadd.f32 %v224, %v309
    %v311 = vpop.f32.mrb[0].mxu0
    %v312 = vadd.f32 %v224, %v311
    %313 = vdwg.mxu0
    %314 = vmatprep.subr.mxu0 %v214
    %315 = vmatpush1.msra.mxu0 %v213
    %316 = vmatprep.subr.mxu0 %v241
    %317 = vmatpush1.msra.mxu0 %v238
    %318 = vmatprep.subr.mxu0 0.0
    %319 = vmatpush1.msra.mxu0 0.0
    %320 = vmatprep.subr.mxu0 0.0
    %321 = vmatpush1.msra.mxu0 0.0
    %322 = vmatprep.subr.mxu0 0.0
    %323 = vmatpush1.msra.mxu0 0.0
    %324 = vmatprep.subr.mxu0 0.0
    %325 = vmatpush1.msra.mxu0 0.0
    %326 = vmatprep.subr.mxu0 0.0
    %327 = vmatpush1.msra.mxu0 0.0
    %328 = vmatprep.subr.mxu0 0.0
    %329 = vmatpush1.msra.mxu0 0.0
    %330 = vmatprep.subr.mxu0 0.0
    %331 = vmatpush1.msra.mxu0 0.0
    %332 = vmatprep.subr.mxu0 0.0
    %333 = vmatpush1.msra.mxu0 0.0
    %334 = vmatprep.subr.mxu0 0.0
    %335 = vmatpush1.msra.mxu0 0.0
    %336 = vmatprep.subr.mxu0 0.0
    %337 = vmatpush1.msra.mxu0 0.0
    %338 = vmatprep.subr.mxu0 0.0
    %339 = vmatpush1.msra.mxu0 0.0
    %340 = vmatprep.subr.mxu0 0.0
    %341 = vmatpush1.msra.mxu0 0.0
    %342 = vmatprep.subr.mxu0 0.0
    %343 = vmatpush1.msra.mxu0 0.0
    %344 = vmatprep.subr.mxu0 0.0
    %345 = vmatpush1.msra.mxu0 0.0
    %346 = vmatprep.subr.mxu0 0.0
    %347 = vmatpush1.msra.mxu0 0.0
    %348 = vmatprep.subr.mxu0 0.0
    %349 = vmatpush1.msra.mxu0 0.0
    %350 = vmatprep.subr.mxu0 0.0
    %351 = vmatpush1.msra.mxu0 0.0
    %352 = vmatprep.subr.mxu0 0.0
    %353 = vmatpush1.msra.mxu0 0.0
    %354 = vmatprep.subr.mxu0 0.0
    %355 = vmatpush1.msra.mxu0 0.0
    %356 = vmatprep.subr.mxu0 0.0
    %357 = vmatpush1.msra.mxu0 0.0
    %358 = vmatprep.subr.mxu0 0.0
    %359 = vmatpush1.msra.mxu0 0.0
    %360 = vmatprep.subr.mxu0 0.0
    %361 = vmatpush1.msra.mxu0 0.0
    %362 = vmatprep.subr.mxu0 0.0
    %363 = vmatpush1.msra.mxu0 0.0
    %364 = vmatprep.subr.mxu0 0.0
    %365 = vmatpush1.msra.mxu0 0.0
    %366 = vmatprep.subr.mxu0 0.0
    %367 = vmatpush1.msra.mxu0 0.0
    %368 = vmatprep.subr.mxu0 0.0
    %369 = vmatpush1.msra.mxu0 0.0
    %370 = vmatprep.subr.mxu0 0.0
    %371 = vmatpush1.msra.mxu0 0.0
    %372 = vmatprep.subr.mxu0 0.0
    %373 = vmatpush1.msra.mxu0 0.0
    %374 = vmatprep.subr.mxu0 0.0
    %375 = vmatpush1.msra.mxu0 0.0
    %376 = vmatprep.subr.mxu0 0.0
    %377 = vmatpush1.msra.mxu0 0.0
    %378 = vmatprep.mubr.f32.mxu0 0.0
    %379 = vmatmul.mubr.f32.gmra.mrb[0].mxu0 %v228
    %v380 = vpop.f32.mrb[0].mxu0
    %v381 = vadd.f32 %v224, %v380
    %v382 = vpop.f32.mrb[0].mxu0
    %v383 = vadd.f32 %v224, %v382
    %384 = vdwg.mxu0
    %v389 = vcombine.low %v310, %v312
    %v390 = vcombine.low %v381, %v383
    %393 = vst [vmem:[#allocation2] sm:$0x77] %v389
    %394 = vst [vmem:[#allocation2 + $0x8] sm:$0x77] %v390
    // Predicated region
    $region22: #{tpu_custom_call.1} parent=1 // pred_check
      _
    $region23: #{tpu_custom_call.1} parent=1 // pred_check_branch
      %396 = sbr.rel (0) target = $region25
    $region24: #{tpu_custom_call.1} parent=1 // pred_region
      %s398 = ssub.s32 256, 256
      %399 = vsyncadd [#allocation3], %s398
      %s401 = sshll.u32 [#allocation2], 4
      %s402 = int_to_ptr.vmem [resolvable:$true] %s401
      %404 = dma.vmem_to_hbm [thread:$0]  %s402, 256, %s5, [#allocation3]
    $region25: #{tpu_custom_call.1} parent=1 // pred_fallthru
      _
    // Predicated region
    $region26: #{tpu_custom_call.1} parent=1 // pred_check
      _
    $region27: #{tpu_custom_call.1} parent=1 // pred_check_branch
      %406 = sbr.rel (0) target = $region29
    $region28: #{tpu_custom_call.1} parent=1 // pred_region
      %407 = dma.done [#allocation3], 256
    $region29: #{tpu_custom_call.1} parent=1 // pred_fallthru
      _
    %408 = vsyncpa [#allocation3], 1

</llo_original>
